<compile_context>
chip_gen: v6e
topology: v6e:2x2x1
jax: 0.10.0
libtpu: 0.0.40
codegen_flags: <defaults>
</compile_context>

<pallas_src>
import functools
import math

import jax
import jax.numpy as jnp
from jax.experimental import pallas as pl
from jax.experimental.pallas import tpu as pltpu

_LANE = 128            # lane width (last-dim alignment)
_MAX_TM = 2048         # beyond this, <1% extra HBM roofline
_SMALL_FLOPS = 2_000_000  # below this, XLA's fused matmul beats kernel overhead


def _round_up(n, m):
    return ((n + m - 1) // m) * m


def _cdiv(a, b):
    return (a + b - 1) // b


def _pad_axis(a, axis, target):
    pad = target - a.shape[axis]
    if pad == 0:
        return a
    widths = [(0, 0)] * a.ndim
    widths[axis] = (0, pad)
    return jnp.pad(a, widths)


def _sublane_granule(dtype):
    # packed sublane granule: 8 rows for 4-byte, 16 for 2-byte, 32 for 1-byte
    return {4: 8, 2: 16, 1: 32}.get(jnp.dtype(dtype).itemsize, 8)


def _tpu_budget():
    """Returns (usable VMEM bytes, lower-cased device kind)."""
    kind = ""
    try:
        kind = jax.devices()[0].device_kind.lower()
    except Exception:
        pass
    cap = None
    try:
        cap = int(pltpu.get_tpu_info().vmem_capacity_bytes)
    except Exception:
        cap = None
    if cap is None or cap <= 0:
        cap = (64 << 20) if "v7" in kind else (128 << 20)
    if "v7" in kind:
        cap = min(cap, 64 << 20)     # per-TensorCore VMEM on v7x
    cap = min(cap, 128 << 20)
    return int(0.85 * cap), kind


def _mlp_kernel(x_ref, w1_ref, b1_ref, w2_ref, b2_ref, o_ref, acc_ref):
    """One (row tile i, hidden chunk k) step of out = ReLU(x@W1+b1)@W2 + b2."""
    k = pl.program_id(1)

    @pl.when(k == 0)
    def _init():
        acc_ref[...] = jnp.zeros_like(acc_ref)

    # fc1 panel: x @ W1[:, k-chunk] + b1[k-chunk], ReLU  (MXU, f32 accumulate)
    h = jnp.dot(x_ref[...], w1_ref[...], preferred_element_type=jnp.float32)
    h = jnp.maximum(h + b1_ref[...].astype(jnp.float32), 0.0)
    # fc2 panel: accumulate h @ W2[k-chunk, :]           (MXU, f32 accumulate)
    acc_ref[...] += jnp.dot(h.astype(w2_ref.dtype), w2_ref[...],
                            preferred_element_type=jnp.float32)

    @pl.when(k == pl.num_programs(1) - 1)
    def _finalize():
        o_ref[...] = (acc_ref[...] + b2_ref[...].astype(jnp.float32)
                      ).astype(o_ref.dtype)


@functools.partial(
    jax.jit, static_argnames=("compute_dtype", "force_pallas", "hidden_chunks"))
def adaptive_layer(x, w1, b1, w2, b2, *, compute_dtype=None, force_pallas=False,
                   hidden_chunks=None):
    """Forward pass of AdaptiveLayer.

    x : (..., in_dim)
    w1: (in_dim, hidden_dim)   (transposed from torch's (hidden, in))
    b1: (hidden_dim,)
    w2: (hidden_dim, out_dim)
    b2: (out_dim,)
    compute_dtype: optional MXU dtype for x/W (e.g. jnp.bfloat16); accumulation
      stays f32, output keeps x.dtype.
    """
    orig_dtype = x.dtype
    orig_shape = x.shape
    in_dim = orig_shape[-1]
    rows = math.prod(orig_shape[:-1])
    hidden_dim = w1.shape[1]
    out_dim = w2.shape[1]

    cdtype = jnp.dtype(compute_dtype) if compute_dtype is not None else jnp.dtype(orig_dtype)

    flops = 2 * rows * hidden_dim * (in_dim + out_dim)
    if (not force_pallas) and flops < _SMALL_FLOPS:
        # Tiny problem: kernel fixed overhead and 32->128 lane padding dominate.
        h = jnp.maximum(
            jnp.dot(x.astype(cdtype), w1.astype(cdtype),
                    preferred_element_type=jnp.float32) + b1, 0.0)
        out = jnp.dot(h.astype(cdtype), w2.astype(cdtype),
                      preferred_element_type=jnp.float32) + b2
        return out.astype(orig_dtype)

    itemsize = cdtype.itemsize
    o_item = jnp.dtype(orig_dtype).itemsize
    b_item = jnp.dtype(b1.dtype).itemsize
    granule = _sublane_granule(cdtype)

    in_p = _round_up(in_dim, _LANE)
    out_p = _round_up(out_dim, _LANE)
    hid_min = _round_up(hidden_dim, _LANE)

    budget, kind = _tpu_budget()

    def tile_bytes(tm, tk, n_k):
        wbuf = 1 if n_k == 1 else 2        # constant blocks are single-buffered
        fixed = (wbuf * (in_p * tk + tk * out_p) * itemsize   # W1 / W2 panels
                 + wbuf * tk * b_item + out_p * b_item)       # b1 panel + b2
        per_row = (2 * in_p * itemsize     # x tile, double-buffered
                   + 2 * out_p * o_item    # out tile, double-buffered
                   + out_p * 4             # f32 accumulator scratch
                   + tk * 4)               # f32 hidden intermediate
        return fixed, per_row

    # --- hidden-dim chunking (K split) so the weight working set fits VMEM ---
    if hidden_chunks is not None:
        tk = max(_LANE, _round_up(_cdiv(hid_min, int(hidden_chunks)), _LANE))
    else:
        tk = hid_min
        for n in range(1, hid_min // _LANE + 1):
            cand = _round_up(_cdiv(hid_min, n), _LANE)
            fixed, per_row = tile_bytes(granule, cand, _cdiv(hid_min, cand))
            tk = cand
            if fixed + granule * per_row <= budget:
                break
    n_k = _cdiv(hid_min, tk)
    hid_p = n_k * tk

    # --- adaptive row tile ---------------------------------------------------
    fixed, per_row = tile_bytes(granule, tk, n_k)
    if budget > fixed:
        tm_budget = max(granule, (budget - fixed) // per_row)
    else:
        tm_budget = granule
    tm = min(_MAX_TM, tm_budget, _round_up(rows, granule))
    tm = max(granule, (tm // granule) * granule)
    # v7x: 2 TensorCores share the "parallel" row axis; keep >= 2 row tiles.
    if "v7" in kind and rows >= 2 * granule:
        tm = min(tm, _round_up(_cdiv(rows, 2), granule))
    # Shrink tm to minimize rows_p padding for the chosen number of row tiles.
    n_i = _cdiv(rows, tm)
    tm = _round_up(_cdiv(rows, n_i), granule)
    rows_p = n_i * tm

    # --- pad operands (zero padding is exact for Linear->ReLU->Linear) -------
    x2 = _pad_axis(_pad_axis(x.reshape(rows, in_dim).astype(cdtype), 1, in_p),
                   0, rows_p)
    w1p = _pad_axis(_pad_axis(w1.astype(cdtype), 0, in_p), 1, hid_p)
    w2p = _pad_axis(_pad_axis(w2.astype(cdtype), 0, hid_p), 1, out_p)
    b1p = _pad_axis(b1.reshape(1, hidden_dim), 1, hid_p)
    b2p = _pad_axis(b2.reshape(1, out_dim), 1, out_p)

    need = fixed + tm * per_row
    vmem_limit = int(max(budget, need + (4 << 20)))

    resident = pl.Buffered(1)   # single-buffer blocks whose index never changes
    if n_k == 1:
        w1_spec = pl.BlockSpec((in_p, tk), lambda i, k: (0, 0), pipeline_mode=resident)
        b1_spec = pl.BlockSpec((1, tk), lambda i, k: (0, 0), pipeline_mode=resident)
        w2_spec = pl.BlockSpec((tk, out_p), lambda i, k: (0, 0), pipeline_mode=resident)
    else:
        w1_spec = pl.BlockSpec((in_p, tk), lambda i, k: (0, k))
        b1_spec = pl.BlockSpec((1, tk), lambda i, k: (0, k))
        w2_spec = pl.BlockSpec((tk, out_p), lambda i, k: (k, 0))
    b2_spec = pl.BlockSpec((1, out_p), lambda i, k: (0, 0), pipeline_mode=resident)

    w_stream = 1 if n_k == 1 else n_i    # weight panels re-fetched per row tile
    cost = pl.CostEstimate(
        flops=2 * rows_p * hid_p * (in_p + out_p),
        transcendentals=0,
        bytes_accessed=(rows_p * in_p * itemsize + rows_p * out_p * o_item
                        + w_stream * (in_p * hid_p + hid_p * out_p) * itemsize
                        + hid_p * b_item + out_p * b_item),
    )

    out = pl.pallas_call(
        _mlp_kernel,
        out_shape=jax.ShapeDtypeStruct((rows_p, out_p), orig_dtype),
        grid=(n_i, n_k),
        in_specs=[
            pl.BlockSpec((tm, in_p), lambda i, k: (i, 0)),   # x row tile (streamed)
            w1_spec, b1_spec, w2_spec, b2_spec,
        ],
        out_specs=pl.BlockSpec((tm, out_p), lambda i, k: (i, 0)),
        scratch_shapes=[pltpu.VMEM((tm, out_p), jnp.float32)],
        compiler_params=pltpu.CompilerParams(
            dimension_semantics=("parallel", "arbitrary"),
            vmem_limit_bytes=vmem_limit,
        ),
        cost_estimate=cost,
    )(x2, w1p, b1p, w2p, b2p)

    out = out[:rows, :out_dim]
    return out.reshape(orig_shape[:-1] + (out_dim,))


def _trunc_normal(key, shape, std=0.02, dtype=jnp.float32):
    # matches timm's trunc_normal_(std=0.02, a=-2, b=2)
    return std * jax.random.truncated_normal(key, -2.0, 2.0, shape, dtype)


def init_adaptive_layer_params(key, in_dim, n_ratio, out_dim, dtype=jnp.float32):
    hidden_dim = int(in_dim * n_ratio)
    k1, k2 = jax.random.split(key)
    # torch Linear weight is (out, in); we store transposed (in, out)
    w1 = _trunc_normal(k1, (hidden_dim, in_dim), dtype=dtype).T
    b1 = jnp.zeros((hidden_dim,), dtype)
    w2 = _trunc_normal(k2, (out_dim, hidden_dim), dtype=dtype).T
    b2 = jnp.zeros((out_dim,), dtype)
    return w1, b1, w2, b2


def _ref_mlp(x, w1, b1, w2, b2):
    return jnp.maximum(x @ w1 + b1, 0.0) @ w2 + b2


if __name__ == "__main__":
    key = jax.random.PRNGKey(0)
    kx1, kp1, kx2, kp2, kx3, kp3 = jax.random.split(key, 6)

    # --- Test 1: 3-D activation (token-MLP shape), Pallas path forced --------
    batch, seq, in_dim = 2, 8, 32
    n_ratio, out_dim = 4.0, 32                       # hidden_dim = 128
    x = jax.random.normal(kx1, (batch, seq, in_dim), jnp.float32)
    w1, b1, w2, b2 = init_adaptive_layer_params(kp1, in_dim, n_ratio, out_dim)
    y = adaptive_layer(x, w1, b1, w2, b2, force_pallas=True)
    jax.block_until_ready(y)
    ref1 = _ref_mlp(x, w1, b1, w2, b2)
    assert y.shape == (batch, seq, out_dim)
    assert jnp.allclose(y, ref1, atol=1e-5, rtol=1e-5)

    # --- Test 2: CLIP-text-feature style 2-D input, unaligned dims -----------
    # (mirrors clip_fc3 = AdaptiveLayer(num_channels, 0.5, in_channels[2]))
    n_txt, ch = 3, 96
    n_ratio2, out_dim2 = 0.5, 80                     # hidden_dim = 48
    xc = jax.random.normal(kx2, (n_txt, ch), jnp.float32)
    w1c, b1c, w2c, b2c = init_adaptive_layer_params(kp2, ch, n_ratio2, out_dim2)
    yc = adaptive_layer(xc, w1c, b1c, w2c, b2c, force_pallas=True)
    jax.block_until_ready(yc)
    assert yc.shape == (n_txt, out_dim2)
    assert jnp.allclose(yc, _ref_mlp(xc, w1c, b1c, w2c, b2c), atol=1e-5, rtol=1e-5)

    # --- Test 3: forced hidden-dim split (K accumulator path) ----------------
    b3, s3, in3 = 4, 16, 32
    n_ratio3, out3 = 8.0, 48                         # hidden_dim = 256 -> 2 chunks
    x3 = jax.random.normal(kx3, (b3, s3, in3), jnp.float32)
    w13, b13, w23, b23 = init_adaptive_layer_params(kp3, in3, n_ratio3, out3)
    y3 = adaptive_layer(x3, w13, b13, w23, b23, force_pallas=True, hidden_chunks=2)
    jax.block_until_ready(y3)
    assert y3.shape == (b3, s3, out3)
    assert jnp.allclose(y3, _ref_mlp(x3, w13, b13, w23, b23), atol=1e-5, rtol=1e-5)

    # --- Test 4: bf16 compute dtype (MXU-native path), loose tolerance -------
    yb = adaptive_layer(x, w1, b1, w2, b2, compute_dtype=jnp.bfloat16,
                        force_pallas=True)
    jax.block_until_ready(yb)
    assert yb.shape == (batch, seq, out_dim)
    assert jnp.allclose(yb, ref1, atol=5e-2, rtol=5e-2)

    # --- Test 5: auto path (small-problem fallback to fused XLA matmuls) -----
    ya = adaptive_layer(x, w1, b1, w2, b2)
    jax.block_until_ready(ya)
    assert jnp.allclose(ya, ref1, atol=1e-5, rtol=1e-5)

    print("KERNEL_OK")
</pallas_src>

<mosaic_0001>
module attributes {stable_mosaic.version = 11 : i64} {
  func.func @_mlp_kernel(%arg0: i32, %arg1: i32, %arg2: memref<16x128xf32, #tpu.memory_space<vmem>>, %arg3: memref<128x128xf32, #tpu.memory_space<vmem>>, %arg4: memref<1x128xf32, #tpu.memory_space<vmem>>, %arg5: memref<128x128xf32, #tpu.memory_space<vmem>>, %arg6: memref<1x128xf32, #tpu.memory_space<vmem>>, %arg7: memref<16x128xf32, #tpu.memory_space<vmem>>, %arg8: memref<16x128xf32, #tpu.memory_space<vmem>>) attributes {dimension_semantics = [#tpu.dimension_semantics<parallel>, #tpu.dimension_semantics<arbitrary>], iteration_bounds = array<i64: 1, 1>, scalar_prefetch = 0 : i64, scratch_operands = 1 : i64, tpu.core_type = #tpu.core_type<tc>, window_params = [{transform_indices = @transform_0, window_bounds = array<i64: 16, 128>}, {pipeline_mode = #tpu.pipeline_mode<synchronous>, transform_indices = @transform_1, window_bounds = array<i64: 128, 128>}, {pipeline_mode = #tpu.pipeline_mode<synchronous>, transform_indices = @transform_2, window_bounds = array<i64: 1, 128>}, {pipeline_mode = #tpu.pipeline_mode<synchronous>, transform_indices = @transform_3, window_bounds = array<i64: 128, 128>}, {pipeline_mode = #tpu.pipeline_mode<synchronous>, transform_indices = @transform_4, window_bounds = array<i64: 1, 128>}, {transform_indices = @transform_5, window_bounds = array<i64: 16, 128>}]} {
    %c0_i32 = arith.constant 0 : i32
    %0 = arith.cmpi eq, %arg1, %c0_i32 : i32
    %1 = arith.extui %0 : i1 to i32
    %c0_i32_0 = arith.constant 0 : i32
    %2 = arith.cmpi ne, %1, %c0_i32_0 : i32
    scf.if %2 {
      %cst_16 = arith.constant 0.000000e+00 : f32
      %19 = vector.broadcast %cst_16 : f32 to vector<16x128xf32>
      %c0_17 = arith.constant 0 : index
      %c0_18 = arith.constant 0 : index
      %20 = vector.load %arg8[%c0_17, %c0_18] : memref<16x128xf32, #tpu.memory_space<vmem>>, vector<16x128xf32>
      tpu.vector_store %arg8[%c0_17, %c0_18], %19 {strides = array<i32>} : memref<16x128xf32, #tpu.memory_space<vmem>>, vector<16x128xf32>,
    } else {
    }
    %c0 = arith.constant 0 : index
    %c0_1 = arith.constant 0 : index
    %3 = vector.load %arg2[%c0, %c0_1] : memref<16x128xf32, #tpu.memory_space<vmem>>, vector<16x128xf32>
    %c0_2 = arith.constant 0 : index
    %c0_3 = arith.constant 0 : index
    %4 = vector.load %arg3[%c0_2, %c0_3] : memref<128x128xf32, #tpu.memory_space<vmem>>, vector<128x128xf32>
    %cst = arith.constant dense<0.000000e+00> : vector<16x128xf32>
    %5 = tpu.matmul %3, %4, %cst {dimension_numbers = #tpu.dot_dimension_numbers<[1], [0], [0], [1], [0, 0, 1, 1], [], []>} : vector<16x128xf32>, vector<128x128xf32>, vector<16x128xf32> -> vector<16x128xf32>
    %c0_4 = arith.constant 0 : index
    %c0_5 = arith.constant 0 : index
    %6 = vector.load %arg4[%c0_4, %c0_5] : memref<1x128xf32, #tpu.memory_space<vmem>>, vector<1x128xf32>
    %7 = vector.broadcast %6 : vector<1x128xf32> to vector<16x128xf32>
    %8 = arith.addf %5, %7 : vector<16x128xf32>
    %cst_6 = arith.constant 0.000000e+00 : f32
    %9 = vector.broadcast %cst_6 : f32 to vector<16x128xf32>
    %10 = arith.maximumf %8, %9 : vector<16x128xf32>
    %c0_7 = arith.constant 0 : index
    %c0_8 = arith.constant 0 : index
    %11 = vector.load %arg8[%c0_7, %c0_8] : memref<16x128xf32, #tpu.memory_space<vmem>>, vector<16x128xf32>
    %c0_9 = arith.constant 0 : index
    %c0_10 = arith.constant 0 : index
    %12 = vector.load %arg5[%c0_9, %c0_10] : memref<128x128xf32, #tpu.memory_space<vmem>>, vector<128x128xf32>
    %cst_11 = arith.constant dense<0.000000e+00> : vector<16x128xf32>
    %13 = tpu.matmul %10, %12, %cst_11 {dimension_numbers = #tpu.dot_dimension_numbers<[1], [0], [0], [1], [0, 0, 1, 1], [], []>} : vector<16x128xf32>, vector<128x128xf32>, vector<16x128xf32> -> vector<16x128xf32>
    %14 = arith.addf %11, %13 : vector<16x128xf32>
    %c0_12 = arith.constant 0 : index
    %c0_13 = arith.constant 0 : index
    %15 = vector.load %arg8[%c0_12, %c0_13] : memref<16x128xf32, #tpu.memory_space<vmem>>, vector<16x128xf32>
    tpu.vector_store %arg8[%c0_12, %c0_13], %14 {strides = array<i32>} : memref<16x128xf32, #tpu.memory_space<vmem>>, vector<16x128xf32>,
    %c0_i32_14 = arith.constant 0 : i32
    %16 = arith.cmpi eq, %arg1, %c0_i32_14 : i32
    %17 = arith.extui %16 : i1 to i32
    %c0_i32_15 = arith.constant 0 : i32
    %18 = arith.cmpi ne, %17, %c0_i32_15 : i32
    scf.if %18 {
      %c0_16 = arith.constant 0 : index
      %c0_17 = arith.constant 0 : index
      %19 = vector.load %arg8[%c0_16, %c0_17] : memref<16x128xf32, #tpu.memory_space<vmem>>, vector<16x128xf32>
      %c0_18 = arith.constant 0 : index
      %c0_19 = arith.constant 0 : index
      %20 = vector.load %arg6[%c0_18, %c0_19] : memref<1x128xf32, #tpu.memory_space<vmem>>, vector<1x128xf32>
      %21 = vector.broadcast %20 : vector<1x128xf32> to vector<16x128xf32>
      %22 = arith.addf %19, %21 : vector<16x128xf32>
      %c0_20 = arith.constant 0 : index
      %c0_21 = arith.constant 0 : index
      %23 = vector.load %arg7[%c0_20, %c0_21] : memref<16x128xf32, #tpu.memory_space<vmem>>, vector<16x128xf32>
      tpu.vector_store %arg7[%c0_20, %c0_21], %22 {strides = array<i32>} : memref<16x128xf32, #tpu.memory_space<vmem>>, vector<16x128xf32>,
    } else {
    }
    return
  }
  func.func @transform_0(%arg0: i32, %arg1: i32) -> (i32, i32) {
    %c0_i32 = arith.constant 0 : i32
    %c0_i32_0 = arith.constant 0 : i32
    return %arg0, %c0_i32 : i32, i32
  }
  func.func @transform_1(%arg0: i32, %arg1: i32) -> (i32, i32) {
    %c0_i32 = arith.constant 0 : i32
    %c0_i32_0 = arith.constant 0 : i32
    %c0_i32_1 = arith.constant 0 : i32
    return %c0_i32, %c0_i32_0 : i32, i32
  }
  func.func @transform_2(%arg0: i32, %arg1: i32) -> (i32, i32) {
    %c0_i32 = arith.constant 0 : i32
    %c0_i32_0 = arith.constant 0 : i32
    %c0_i32_1 = arith.constant 0 : i32
    return %c0_i32, %c0_i32_0 : i32, i32
  }
  func.func @transform_3(%arg0: i32, %arg1: i32) -> (i32, i32) {
    %c0_i32 = arith.constant 0 : i32
    %c0_i32_0 = arith.constant 0 : i32
    %c0_i32_1 = arith.constant 0 : i32
    return %c0_i32, %c0_i32_0 : i32, i32
  }
  func.func @transform_4(%arg0: i32, %arg1: i32) -> (i32, i32) {
    %c0_i32 = arith.constant 0 : i32
    %c0_i32_0 = arith.constant 0 : i32
    %c0_i32_1 = arith.constant 0 : i32
    return %c0_i32, %c0_i32_0 : i32, i32
  }
  func.func @transform_5(%arg0: i32, %arg1: i32) -> (i32, i32) {
    %c0_i32 = arith.constant 0 : i32
    %c0_i32_0 = arith.constant 0 : i32
    return %arg0, %c0_i32 : i32, i32
  }
}

</mosaic_0001>

<llo_original>
// kernel: adaptive_layer.1
$region0: #{adaptive_layer.1}
  #allocation0 [shape = 'u32[]', space=smem, size = 0x4, offset = 0x4, fixed_abs, tag = 'smem constant byte address 0x4 - core index']
  #allocation1 [shape = 'u32[144,128]{1,0:T(1,128)}', space=vmem, size = 0x12000, scoped, tag = 'internal scratch']
  #allocation2 [shape = 'f32[16,128]{1,0:T(8,128)}', space=vmem, size = 0x2000, scoped, tag = 'scratch operand']
  %s0 = inlined_call_operand.vmem [shape: f32[16,128], index: 0, kind: input, shape index: {}]
  %s1 = inlined_call_operand.vmem [shape: f32[128,128], index: 1, kind: input, shape index: {}]
  %s2 = inlined_call_operand.vmem [shape: f32[1,128], index: 2, kind: input, shape index: {}]
  %s3 = inlined_call_operand.vmem [shape: f32[128,128], index: 3, kind: input, shape index: {}]
  %s4 = inlined_call_operand.vmem [shape: f32[1,128], index: 4, kind: input, shape index: {}]
  %s5 = inlined_call_operand.vmem [shape: f32[16,128], index: 5, kind: output, shape index: {}]
  %s6 = sld [smem:[#allocation0]]
  $region38: #{adaptive_layer.1} parent=0
    _
  %s8 = ssub.s32 1, %s6
  %s9 = scalar_select 0, %s8, %s6
  // Predicated region
  $region2: #{adaptive_layer.1} parent=0 // pred_check
    _
  $region3: #{adaptive_layer.1} parent=0 // pred_check_branch
    %11 = sbr.rel (0) target = $region5
  $region4: #{adaptive_layer.1} parent=0 // pred_region
    _
  $region5: #{adaptive_layer.1} parent=0 // pred_fallthru
    _
  // Predicated region
  $region6: #{adaptive_layer.1} parent=0 // pred_check
    _
  $region7: #{adaptive_layer.1} parent=0 // pred_check_branch
    %13 = sbr.rel (0) target = $region9
  $region8: #{adaptive_layer.1} parent=0 // pred_region
    _
  $region9: #{adaptive_layer.1} parent=0 // pred_fallthru
    _
  // Predicated region
  $region10: #{adaptive_layer.1} parent=0 // pred_check
    _
  $region11: #{adaptive_layer.1} parent=0 // pred_check_branch
    %15 = sbr.rel (0) target = $region13
  $region12: #{adaptive_layer.1} parent=0 // pred_region
    _
  $region13: #{adaptive_layer.1} parent=0 // pred_fallthru
    _
  // Predicated region
  $region14: #{adaptive_layer.1} parent=0 // pred_check
    _
  $region15: #{adaptive_layer.1} parent=0 // pred_check_branch
    %17 = sbr.rel (0) target = $region17
  $region16: #{adaptive_layer.1} parent=0 // pred_region
    _
  $region17: #{adaptive_layer.1} parent=0 // pred_fallthru
    _
  // Predicated region
  $region18: #{adaptive_layer.1} parent=0 // pred_check
    _
  $region19: #{adaptive_layer.1} parent=0 // pred_check_branch
    %19 = sbr.rel (0) target = $region21
  $region20: #{adaptive_layer.1} parent=0 // pred_region
    _
  $region21: #{adaptive_layer.1} parent=0 // pred_fallthru
    _
  %p20 = scmp.eq.s32.totalorder 0, 0
  // Predicated region
  $region22: #{adaptive_layer.1} parent=0 // pred_check
    %p21 = pneg %p20
  $region23: #{adaptive_layer.1} parent=0 // pred_check_branch
    %23 = sbr.rel (%p21) target = $region25
  $region24: #{adaptive_layer.1} parent=0 // pred_region
    %24 = vst [vmem:[#allocation2] sm:$0xff] 0.0
    %25 = vst [vmem:[#allocation2 + $0x8] sm:$0xff] 0.0
  $region25: #{adaptive_layer.1} parent=0 // pred_fallthru
    _
  %v26 = vld [vmem:[%s0] sm:$0xff]
  %v27 = vld [vmem:[%s0 + $0x8] sm:$0xff]
  %v28 = vld [vmem:[%s1] sm:$0xff]
  %v29 = vld [vmem:[%s1 + $0x8] sm:$0xff]
  %v30 = vld [vmem:[%s1 + $0x10] sm:$0xff]
  %v31 = vld [vmem:[%s1 + $0x18] sm:$0xff]
  %v32 = vld [vmem:[%s1 + $0x20] sm:$0xff]
  %v33 = vld [vmem:[%s1 + $0x28] sm:$0xff]
  %v34 = vld [vmem:[%s1 + $0x30] sm:$0xff]
  %v35 = vld [vmem:[%s1 + $0x38] sm:$0xff]
  %v36 = vld [vmem:[%s1 + $0x40] sm:$0xff]
  %v37 = vld [vmem:[%s1 + $0x48] sm:$0xff]
  %v38 = vld [vmem:[%s1 + $0x50] sm:$0xff]
  %v39 = vld [vmem:[%s1 + $0x58] sm:$0xff]
  %v40 = vld [vmem:[%s1 + $0x60] sm:$0xff]
  %v41 = vld [vmem:[%s1 + $0x68] sm:$0xff]
  %v42 = vld [vmem:[%s1 + $0x70] sm:$0xff]
  %v43 = vld [vmem:[%s1 + $0x78] sm:$0xff]
  %v44 = vld [vmem:[%s2] sm:$0x1]
  %v46 = vlaneseq
  %v47 = vshrl.u32 %v46, 7
  %v48 = vsub.s32 0, %v47
  %v49 = vrot.slane %v44, %v48
  %51 = vmatprep.subr.mxu0 0.0
  %52 = vmatpush1.msra.mxu0 %v43
  %53 = vmatprep.subr.mxu0 0.0
  %54 = vmatpush1.msra.mxu0 %v42
  %55 = vmatprep.subr.mxu0 0.0
  %56 = vmatpush1.msra.mxu0 %v41
  %57 = vmatprep.subr.mxu0 0.0
  %58 = vmatpush1.msra.mxu0 %v40
  %59 = vmatprep.subr.mxu0 0.0
  %60 = vmatpush1.msra.mxu0 %v39
  %61 = vmatprep.subr.mxu0 0.0
  %62 = vmatpush1.msra.mxu0 %v38
  %63 = vmatprep.subr.mxu0 0.0
  %64 = vmatpush1.msra.mxu0 %v37
  %65 = vmatprep.subr.mxu0 0.0
  %66 = vmatpush1.msra.mxu0 %v36
  %67 = vmatprep.subr.mxu0 0.0
  %68 = vmatpush1.msra.mxu0 %v35
  %69 = vmatprep.subr.mxu0 0.0
  %70 = vmatpush1.msra.mxu0 %v34
  %71 = vmatprep.subr.mxu0 0.0
  %72 = vmatpush1.msra.mxu0 %v33
  %73 = vmatprep.subr.mxu0 0.0
  %74 = vmatpush1.msra.mxu0 %v32
  %75 = vmatprep.subr.mxu0 0.0
  %76 = vmatpush1.msra.mxu0 %v31
  %77 = vmatprep.subr.mxu0 0.0
  %78 = vmatpush1.msra.mxu0 %v30
  %79 = vmatprep.subr.mxu0 0.0
  %80 = vmatpush1.msra.mxu0 %v29
  %81 = vmatprep.subr.mxu0 0.0
  %82 = vmatpush1.msra.mxu0 %v28
  %83 = vmatprep.subr.mxu0 0.0
  %84 = vmatpush2.msra.mxu0 0.0
  %85 = vmatprep.subr.mxu0 0.0
  %86 = vmatpush2.msra.mxu0 0.0
  %87 = vmatprep.subr.mxu0 0.0
  %88 = vmatpush2.msra.mxu0 0.0
  %89 = vmatprep.subr.mxu0 0.0
  %90 = vmatpush2.msra.mxu0 0.0
  %91 = vmatprep.subr.mxu0 0.0
  %92 = vmatpush2.msra.mxu0 0.0
  %93 = vmatprep.subr.mxu0 0.0
  %94 = vmatpush2.msra.mxu0 0.0
  %95 = vmatprep.subr.mxu0 0.0
  %96 = vmatpush2.msra.mxu0 0.0
  %97 = vmatprep.subr.mxu0 0.0
  %98 = vmatpush2.msra.mxu0 0.0
  %99 = vmatprep.subr.mxu0 0.0
  %100 = vmatpush2.msra.mxu0 0.0
  %101 = vmatprep.subr.mxu0 0.0
  %102 = vmatpush2.msra.mxu0 0.0
  %103 = vmatprep.subr.mxu0 0.0
  %104 = vmatpush2.msra.mxu0 0.0
  %105 = vmatprep.subr.mxu0 0.0
  %106 = vmatpush2.msra.mxu0 0.0
  %107 = vmatprep.subr.mxu0 0.0
  %108 = vmatpush2.msra.mxu0 0.0
  %109 = vmatprep.subr.mxu0 0.0
  %110 = vmatpush2.msra.mxu0 0.0
  %111 = vmatprep.subr.mxu0 0.0
  %112 = vmatpush2.msra.mxu0 0.0
  %113 = vmatprep.subr.mxu0 0.0
  %114 = vmatpush2.msra.mxu0 0.0
  %115 = vmatprep.mubr.f32.mxu0 0.0
  %116 = vmatmul.mubr.f32.gmra.mxu0 %v26
  %v117 = vpop.f32.mrf.mxu0
  %v118 = vadd.f32 %v49, %v117
  %v119 = vpop.f32.mrf.mxu0
  %120 = vmatprep.mubr.f32.mxu0 0.0
  %121 = vmatmul.mubr.f32.gmra.mxu0 %v27
  %v122 = vpop.f32.mrf.mxu0
  %v123 = vadd.f32 %v49, %v122
  %v124 = vpop.f32.mrf.mxu0
  %125 = vdwg.mxu0
  %v126 = vmax.f32 %v118, 0.0
  %v127 = vmax.f32 %v123, 0.0
  %v128 = vld [vmem:[#allocation2] sm:$0xff]
  %v129 = vld [vmem:[#allocation2 + $0x8] sm:$0xff]
  %v130 = vld [vmem:[%s3] sm:$0xff]
  %v131 = vld [vmem:[%s3 + $0x8] sm:$0xff]
  %v132 = vld [vmem:[%s3 + $0x10] sm:$0xff]
  %v133 = vld [vmem:[%s3 + $0x18] sm:$0xff]
  %v134 = vld [vmem:[%s3 + $0x20] sm:$0xff]
  %v135 = vld [vmem:[%s3 + $0x28] sm:$0xff]
  %v136 = vld [vmem:[%s3 + $0x30] sm:$0xff]
  %v137 = vld [vmem:[%s3 + $0x38] sm:$0xff]
  %v138 = vld [vmem:[%s3 + $0x40] sm:$0xff]
  %v139 = vld [vmem:[%s3 + $0x48] sm:$0xff]
  %v140 = vld [vmem:[%s3 + $0x50] sm:$0xff]
  %v141 = vld [vmem:[%s3 + $0x58] sm:$0xff]
  %v142 = vld [vmem:[%s3 + $0x60] sm:$0xff]
  %v143 = vld [vmem:[%s3 + $0x68] sm:$0xff]
  %v144 = vld [vmem:[%s3 + $0x70] sm:$0xff]
  %v145 = vld [vmem:[%s3 + $0x78] sm:$0xff]
  %146 = vmatprep.subr.mxu0 0.0
  %147 = vmatpush1.msra.mxu0 %v145
  %148 = vmatprep.subr.mxu0 0.0
  %149 = vmatpush1.msra.mxu0 %v144
  %150 = vmatprep.subr.mxu0 0.0
  %151 = vmatpush1.msra.mxu0 %v143
  %152 = vmatprep.subr.mxu0 0.0
  %153 = vmatpush1.msra.mxu0 %v142
  %154 = vmatprep.subr.mxu0 0.0
  %155 = vmatpush1.msra.mxu0 %v141
  %156 = vmatprep.subr.mxu0 0.0
  %157 = vmatpush1.msra.mxu0 %v140
  %158 = vmatprep.subr.mxu0 0.0
  %159 = vmatpush1.msra.mxu0 %v139
  %160 = vmatprep.subr.mxu0 0.0
  %161 = vmatpush1.msra.mxu0 %v138
  %162 = vmatprep.subr.mxu0 0.0
  %163 = vmatpush1.msra.mxu0 %v137
  %164 = vmatprep.subr.mxu0 0.0
  %165 = vmatpush1.msra.mxu0 %v136
  %166 = vmatprep.subr.mxu0 0.0
  %167 = vmatpush1.msra.mxu0 %v135
  %168 = vmatprep.subr.mxu0 0.0
  %169 = vmatpush1.msra.mxu0 %v134
  %170 = vmatprep.subr.mxu0 0.0
  %171 = vmatpush1.msra.mxu0 %v133
  %172 = vmatprep.subr.mxu0 0.0
  %173 = vmatpush1.msra.mxu0 %v132
  %174 = vmatprep.subr.mxu0 0.0
  %175 = vmatpush1.msra.mxu0 %v131
  %176 = vmatprep.subr.mxu0 0.0
  %177 = vmatpush1.msra.mxu0 %v130
  %178 = vmatprep.subr.mxu0 0.0
  %179 = vmatpush2.msra.mxu0 0.0
  %180 = vmatprep.subr.mxu0 0.0
  %181 = vmatpush2.msra.mxu0 0.0
  %182 = vmatprep.subr.mxu0 0.0
  %183 = vmatpush2.msra.mxu0 0.0
  %184 = vmatprep.subr.mxu0 0.0
  %185 = vmatpush2.msra.mxu0 0.0
  %186 = vmatprep.subr.mxu0 0.0
  %187 = vmatpush2.msra.mxu0 0.0
  %188 = vmatprep.subr.mxu0 0.0
  %189 = vmatpush2.msra.mxu0 0.0
  %190 = vmatprep.subr.mxu0 0.0
  %191 = vmatpush2.msra.mxu0 0.0
  %192 = vmatprep.subr.mxu0 0.0
  %193 = vmatpush2.msra.mxu0 0.0
  %194 = vmatprep.subr.mxu0 0.0
  %195 = vmatpush2.msra.mxu0 0.0
  %196 = vmatprep.subr.mxu0 0.0
  %197 = vmatpush2.msra.mxu0 0.0
  %198 = vmatprep.subr.mxu0 0.0
  %199 = vmatpush2.msra.mxu0 0.0
  %200 = vmatprep.subr.mxu0 0.0
  %201 = vmatpush2.msra.mxu0 0.0
  %202 = vmatprep.subr.mxu0 0.0
  %203 = vmatpush2.msra.mxu0 0.0
  %204 = vmatprep.subr.mxu0 0.0
  %205 = vmatpush2.msra.mxu0 0.0
  %206 = vmatprep.subr.mxu0 0.0
  %207 = vmatpush2.msra.mxu0 0.0
  %208 = vmatprep.subr.mxu0 0.0
  %209 = vmatpush2.msra.mxu0 0.0
  %210 = vmatprep.mubr.f32.mxu0 0.0
  %211 = vmatmul.mubr.f32.gmra.mxu0 %v126
  %v212 = vpop.f32.mrf.mxu0
  %v213 = vadd.f32 0.0, %v212
  %v214 = vpop.f32.mrf.mxu0
  %215 = vmatprep.mubr.f32.mxu0 0.0
  %216 = vmatmul.mubr.f32.gmra.mxu0 %v127
  %v217 = vpop.f32.mrf.mxu0
  %v218 = vadd.f32 0.0, %v217
  %v219 = vpop.f32.mrf.mxu0
  %220 = vdwg.mxu0
  %v221 = vadd.f32 %v128, %v213
  %v222 = vadd.f32 %v129, %v218
  %223 = vst [vmem:[#allocation2] sm:$0xff] %v221
  %224 = vst [vmem:[#allocation2 + $0x8] sm:$0xff] %v222
  // Predicated region
  $region26: #{adaptive_layer.1} parent=0 // pred_check
    %p225 = pneg %p20
  $region27: #{adaptive_layer.1} parent=0 // pred_check_branch
    %227 = sbr.rel (%p225) target = $region29
  $region28: #{adaptive_layer.1} parent=0 // pred_region
    %v228 = vld [vmem:[#allocation2] sm:$0xff]
    %v229 = vld [vmem:[#allocation2 + $0x8] sm:$0xff]
    %v230 = vld [vmem:[%s4] sm:$0x1]
    %v232 = vlaneseq
    %v233 = vshrl.u32 %v232, 7
    %v234 = vsub.s32 0, %v233
    %v235 = vrot.slane %v230, %v234
    %v237 = vadd.f32 %v228, %v235
    %v238 = vadd.f32 %v229, %v235
    %239 = vst [vmem:[%s5] sm:$0xff] %v237
    %240 = vst [vmem:[%s5 + $0x8] sm:$0xff] %v238
  $region29: #{adaptive_layer.1} parent=0 // pred_fallthru
    _
  // Predicated region
  $region30: #{adaptive_layer.1} parent=0 // pred_check
    _
  $region31: #{adaptive_layer.1} parent=0 // pred_check_branch
    %242 = sbr.rel (0) target = $region33
  $region32: #{adaptive_layer.1} parent=0 // pred_region
    _
  $region33: #{adaptive_layer.1} parent=0 // pred_fallthru
    _
  // Predicated region
  $region34: #{adaptive_layer.1} parent=0 // pred_check
    _
  $region35: #{adaptive_layer.1} parent=0 // pred_check_branch
    %244 = sbr.rel (0) target = $region37
  $region36: #{adaptive_layer.1} parent=0 // pred_region
    _
  $region37: #{adaptive_layer.1} parent=0 // pred_fallthru
    _

</llo_original>
